<compile_context>
chip_gen: v7x
topology: tpu7x:2x2x1
jax: 0.10.0
libtpu: 0.0.40
codegen_flags: <defaults>
</compile_context>

<pallas_src>
import math

import jax
import jax.numpy as jnp
from jax.experimental import pallas as pl
from jax.experimental.pallas import tpu as pltpu


def _round_up(x, m):
    return ((x + m - 1) // m) * m


def _mha_kernel(x_ref, wq_ref, bq_ref, wo_ref, bo_ref, o_ref, acc_ref):
    """One grid step == (batch block b, head h).

    x_ref   : (3, Bt, S, E) bf16  stacked [query; key; value] activations
    wq_ref  : (1, E, hd)    bf16  head h's q-projection weight (transposed)
    bq_ref  : (1, 1, hd)    f32   head h's q-projection bias
    wo_ref  : (1, hd, P)    bf16  head h's rows of output_linear weight (lane padded)
    bo_ref  : (1, P)        f32   output_linear bias (lane padded)
    o_ref   : (Bt, S, P)          output block (resident across the head axis)
    acc_ref : (Bt*S, P)     f32   scratch accumulator over heads
    """
    h = pl.program_id(1)
    _, bt, s, e = x_ref.shape
    hd = wq_ref.shape[-1]
    n = bt * s
    scale = 1.0 / math.sqrt(hd)

    # Fused q/k/v projection for this head: one [3n, E] @ [E, hd] MXU matmul.
    x = x_ref[...].reshape(3 * n, e)                                     # bf16
    proj = jnp.dot(x, wq_ref[0], preferred_element_type=jnp.float32) + bq_ref[0]
    proj = proj.reshape(3, bt, s, hd)                                    # f32

    q = (proj[0] * scale).astype(jnp.bfloat16)                           # (Bt,S,hd)
    k = proj[1].astype(jnp.bfloat16)
    v = proj[2].astype(jnp.bfloat16)

    # Batched scaled-dot-product attention over the batch block (no masks in ref).
    sc = jnp.einsum("bqd,bkd->bqk", q, k, preferred_element_type=jnp.float32)
    sc = sc - jnp.max(sc, axis=-1, keepdims=True)
    p = jnp.exp(sc)
    w = p * pl.reciprocal(jnp.sum(p, axis=-1, keepdims=True), approx=True)
    ctx = jnp.einsum("bqk,bkd->bqd", w.astype(jnp.bfloat16), v,
                     preferred_element_type=jnp.float32)                 # (Bt,S,hd)

    # Head h's contribution to output_linear (concat-then-linear == sum over heads).
    part = jnp.dot(ctx.reshape(n, hd).astype(jnp.bfloat16), wo_ref[0],
                   preferred_element_type=jnp.float32)                   # (n, P)

    @pl.when(h == 0)
    def _():
        acc_ref[...] = jnp.zeros_like(acc_ref)

    acc_ref[...] += part

    @pl.when(h == pl.num_programs(1) - 1)
    def _():
        out = acc_ref[...] + bo_ref[...]                                 # (n, P)
        o_ref[...] = out.reshape(bt, s, out.shape[-1]).astype(o_ref.dtype)


def _pick_block_b(batch, s, e, hd, p, out_itemsize, budget_bytes):
    """Largest divisor of `batch` whose honest per-step VMEM estimate fits."""
    def est(bb):
        n = bb * s
        x_blk = 2 * (3 * n * e * 2)                           # bf16 stacked input, 2 buffers
        w_blk = 2 * ((e * hd + hd * p) * 2 + (hd + p) * 4)    # per-head weights + biases
        o_blk = 2 * (n * p * out_itemsize)                    # output block, 2 buffers
        acc = n * p * 4                                       # f32 accumulator scratch
        inter = 3 * n * hd * 8 + bb * s * s * 12 + n * p * 8  # proj/q/k/v/scores/part values
        return x_blk + w_blk + o_blk + acc + inter

    best = 1
    for bb in range(1, batch + 1):
        if batch % bb:
            continue
        if bb > 1 and bb > batch // 2:
            continue   # keep >= 2 parallel batch blocks (feeds both v7x TensorCores)
        if est(bb) <= budget_bytes:
            best = max(best, bb)
    return best


def multi_head_attention(query, key, value, wq, bq, wo, bo, *, block_b=None):
    """query/key/value: [B,S,E]; wq: [H,hd,E]; bq: [H,hd]; wo: [out,E]; bo: [out]."""
    B, S, E = query.shape
    H, hd, _ = wq.shape
    out_dim = wo.shape[0]
    P = _round_up(out_dim, 128)   # lane-dense output slab; sliced back after the call

    cdt = jnp.bfloat16
    # Stack q/k/v once in the wrapper (no in-kernel concat) and cast for the MXU.
    x_all = jnp.stack([query, key, value], axis=0).astype(cdt)            # [3,B,S,E]
    wq_heads = jnp.transpose(wq, (0, 2, 1)).astype(cdt)                   # [H,E,hd]
    bq_heads = bq.reshape(H, 1, hd).astype(jnp.float32)                   # [H,1,hd]
    wo_heads = jnp.pad(wo.T.reshape(H, hd, out_dim),
                       ((0, 0), (0, 0), (0, P - out_dim))).astype(cdt)    # [H,hd,P]
    bo_pad = jnp.pad(bo, (0, P - out_dim)).reshape(1, P).astype(jnp.float32)

    out_itemsize = jnp.dtype(query.dtype).itemsize
    if block_b is None:
        block_b = _pick_block_b(B, S, E, hd, P, out_itemsize,
                                budget_bytes=24 << 20)   # fits v5e/v6e/v7x comfortably
    while B % block_b != 0:
        block_b -= 1

    out_padded = pl.pallas_call(
        _mha_kernel,
        out_shape=jax.ShapeDtypeStruct((B, S, P), query.dtype),
        grid=(B // block_b, H),
        in_specs=[
            pl.BlockSpec((3, block_b, S, E), lambda b, h: (0, b, 0, 0)),  # stacked q/k/v
            pl.BlockSpec((1, E, hd), lambda b, h: (h, 0, 0)),             # per-head Wq^T
            pl.BlockSpec((1, 1, hd), lambda b, h: (h, 0, 0)),             # per-head bq
            pl.BlockSpec((1, hd, P), lambda b, h: (h, 0, 0)),             # per-head Wo rows
            pl.BlockSpec((1, P), lambda b, h: (0, 0)),                    # bo (padded)
        ],
        out_specs=pl.BlockSpec((block_b, S, P), lambda b, h: (b, 0, 0)),
        scratch_shapes=[pltpu.VMEM((block_b * S, P), jnp.float32)],
        compiler_params=pltpu.CompilerParams(
            dimension_semantics=("parallel", "arbitrary"),
            vmem_limit_bytes=48 << 20,   # > v5e's 16MiB scoped default, < v7x's 64MiB physical
        ),
    )(x_all, wq_heads, bq_heads, wo_heads, bo_pad)

    return out_padded[..., :out_dim]


def _reference(query, key, value, wq, bq, wo, bo):
    """Pure-JAX (f32) mirror of the PyTorch forward, for a correctness check."""
    H, hd, _ = wq.shape
    outs = []
    for h in range(H):
        q = query @ wq[h].T + bq[h]
        k = key @ wq[h].T + bq[h]
        v = value @ wq[h].T + bq[h]
        scores = jnp.einsum('bsd,btd->bst', q, k) / math.sqrt(hd)
        w = jax.nn.softmax(scores, axis=-1)
        outs.append(jnp.einsum('bst,btd->bsd', w, v))
    x = jnp.concatenate(outs, axis=-1)
    return x @ wo.T + bo


if __name__ == "__main__":
    # Small config: hidden_size=32, num_attention_heads=4 -> head_dim=8
    B, S, E, H = 2, 8, 32, 4
    hd = E // H

    key0 = jax.random.PRNGKey(0)
    kq, kk, kv, kwq, kbq, kwo, kbo = jax.random.split(key0, 7)

    query = jax.random.normal(kq, (B, S, E), dtype=jnp.float32)
    key_ = jax.random.normal(kk, (B, S, E), dtype=jnp.float32)
    value = jax.random.normal(kv, (B, S, E), dtype=jnp.float32)

    # Deterministic synthetic parameters (PyTorch nn.Linear weight layout [out, in]).
    wq = jax.random.normal(kwq, (H, hd, E), dtype=jnp.float32) * 0.1
    bq = jax.random.normal(kbq, (H, hd), dtype=jnp.float32) * 0.1
    wo = jax.random.normal(kwo, (hd, E), dtype=jnp.float32) * 0.1
    bo = jax.random.normal(kbo, (hd,), dtype=jnp.float32) * 0.1

    out = multi_head_attention(query, key_, value, wq, bq, wo, bo)
    out = jax.block_until_ready(out)

    ref = _reference(query, key_, value, wq, bq, wo, bo)
    assert out.shape == (B, S, hd), out.shape
    # bf16 MXU matmuls (f32 accumulate) -> loosened tolerance vs f32 reference.
    assert jnp.allclose(out, ref, atol=2e-2, rtol=2e-2), "mismatch vs reference"

    print("KERNEL_OK")
</pallas_src>

<mosaic_0001>
module attributes {stable_mosaic.version = 11 : i64} {
  func.func @_mha_kernel(%arg0: i32, %arg1: i32, %arg2: memref<3x1x8x32xbf16, #tpu.memory_space<vmem>>, %arg3: memref<1x32x8xbf16, #tpu.memory_space<vmem>>, %arg4: memref<1x1x8xf32, #tpu.memory_space<vmem>>, %arg5: memref<1x8x128xbf16, #tpu.memory_space<vmem>>, %arg6: memref<1x128xf32, #tpu.memory_space<vmem>>, %arg7: memref<1x8x128xf32, #tpu.memory_space<vmem>>, %arg8: memref<8x128xf32, #tpu.memory_space<vmem>>) attributes {dimension_semantics = [#tpu.dimension_semantics<parallel>, #tpu.dimension_semantics<arbitrary>], iteration_bounds = array<i64: 2, 4>, scalar_prefetch = 0 : i64, scratch_operands = 1 : i64, tpu.core_type = #tpu.core_type<tc>, window_params = [{transform_indices = @transform_0, window_bounds = array<i64: 3, 1, 8, 32>}, {transform_indices = @transform_1, window_bounds = array<i64: 1, 32, 8>}, {transform_indices = @transform_2, window_bounds = array<i64: 1, 1, 8>}, {transform_indices = @transform_3, window_bounds = array<i64: 1, 8, 128>}, {pipeline_mode = #tpu.pipeline_mode<synchronous>, transform_indices = @transform_4, window_bounds = array<i64: 1, 128>}, {transform_indices = @transform_5, window_bounds = array<i64: 1, 8, 128>}]} {
    %c0 = arith.constant 0 : index
    %c0_0 = arith.constant 0 : index
    %c0_1 = arith.constant 0 : index
    %c0_2 = arith.constant 0 : index
    %0 = vector.load %arg2[%c0, %c0_0, %c0_1, %c0_2] : memref<3x1x8x32xbf16, #tpu.memory_space<vmem>>, vector<3x1x8x32xbf16>
    %1 = vector.shape_cast %0 : vector<3x1x8x32xbf16> to vector<24x32xbf16>
    %c0_3 = arith.constant 0 : index
    %c0_4 = arith.constant 0 : index
    %c0_5 = arith.constant 0 : index
    %2 = vector.load %arg3[%c0_3, %c0_4, %c0_5] : memref<1x32x8xbf16, #tpu.memory_space<vmem>>, vector<1x32x8xbf16>
    %3 = vector.shape_cast %2 : vector<1x32x8xbf16> to vector<32x8xbf16>
    %cst = arith.constant dense<0.000000e+00> : vector<24x8xf32>
    %4 = tpu.matmul %1, %3, %cst {dimension_numbers = #tpu.dot_dimension_numbers<[1], [0], [0], [1], [0, 0, 1, 1], [], []>} : vector<24x32xbf16>, vector<32x8xbf16>, vector<24x8xf32> -> vector<24x8xf32>
    %c0_6 = arith.constant 0 : index
    %c0_7 = arith.constant 0 : index
    %c0_8 = arith.constant 0 : index
    %5 = vector.load %arg4[%c0_6, %c0_7, %c0_8] : memref<1x1x8xf32, #tpu.memory_space<vmem>>, vector<1x1x8xf32>
    %6 = vector.shape_cast %5 : vector<1x1x8xf32> to vector<1x8xf32>
    %7 = vector.broadcast %6 : vector<1x8xf32> to vector<24x8xf32>
    %8 = arith.addf %4, %7 : vector<24x8xf32>
    %9 = vector.shape_cast %8 : vector<24x8xf32> to vector<3x1x8x8xf32>
    %10 = vector.extract_strided_slice %9 {offsets = [0, 0, 0, 0], sizes = [1, 1, 8, 8], strides = [1, 1, 1, 1]} : vector<3x1x8x8xf32> to vector<1x1x8x8xf32>
    %11 = vector.shape_cast %10 : vector<1x1x8x8xf32> to vector<1x8x8xf32>
    %cst_9 = arith.constant 0.353553385 : f32
    %12 = vector.broadcast %cst_9 : f32 to vector<1x8x8xf32>
    %13 = arith.mulf %11, %12 : vector<1x8x8xf32>
    %14 = arith.truncf %13 : vector<1x8x8xf32> to vector<1x8x8xbf16>
    %15 = vector.extract_strided_slice %9 {offsets = [1, 0, 0, 0], sizes = [1, 1, 8, 8], strides = [1, 1, 1, 1]} : vector<3x1x8x8xf32> to vector<1x1x8x8xf32>
    %16 = vector.shape_cast %15 : vector<1x1x8x8xf32> to vector<1x8x8xf32>
    %17 = arith.truncf %16 : vector<1x8x8xf32> to vector<1x8x8xbf16>
    %18 = vector.extract_strided_slice %9 {offsets = [2, 0, 0, 0], sizes = [1, 1, 8, 8], strides = [1, 1, 1, 1]} : vector<3x1x8x8xf32> to vector<1x1x8x8xf32>
    %19 = vector.shape_cast %18 : vector<1x1x8x8xf32> to vector<1x8x8xf32>
    %20 = arith.truncf %19 : vector<1x8x8xf32> to vector<1x8x8xbf16>
    "tpu.trace_start"() <{level = 10 : i32, message = "bqd,bkd->bqk"}> : () -> ()
    %cst_10 = arith.constant dense<0.000000e+00> : vector<1x8x8xf32>
    %21 = tpu.matmul %14, %17, %cst_10 {dimension_numbers = #tpu.dot_dimension_numbers<[2], [2], [1], [1], [0, 0, 0, 1, 1, 1], [0], [0]>} : vector<1x8x8xbf16>, vector<1x8x8xbf16>, vector<1x8x8xf32> -> vector<1x8x8xf32>
    "tpu.trace_stop"() : () -> ()
    %cst_11 = arith.constant dense<0xFF800000> : vector<1x8xf32>
    %22 = vector.multi_reduction <maximumf>, %21, %cst_11 [2] : vector<1x8x8xf32> to vector<1x8xf32>
    %23 = vector.shape_cast %22 : vector<1x8xf32> to vector<1x8x1xf32>
    %24 = vector.broadcast %23 : vector<1x8x1xf32> to vector<1x8x8xf32>
    %25 = arith.subf %21, %24 : vector<1x8x8xf32>
    %26 = math.exp %25 : vector<1x8x8xf32>
    %cst_12 = arith.constant dense<0.000000e+00> : vector<1x8xf32>
    %27 = vector.multi_reduction <add>, %26, %cst_12 [2] : vector<1x8x8xf32> to vector<1x8xf32>
    %28 = vector.shape_cast %27 : vector<1x8xf32> to vector<1x8x1xf32>
    %29 = tpu.reciprocal %28 {approx = true} : vector<1x8x1xf32> -> vector<1x8x1xf32>
    %30 = vector.broadcast %29 : vector<1x8x1xf32> to vector<1x8x8xf32>
    %31 = arith.mulf %26, %30 : vector<1x8x8xf32>
    %32 = arith.truncf %31 : vector<1x8x8xf32> to vector<1x8x8xbf16>
    "tpu.trace_start"() <{level = 10 : i32, message = "bqk,bkd->bqd"}> : () -> ()
    %cst_13 = arith.constant dense<0.000000e+00> : vector<1x8x8xf32>
    %33 = tpu.matmul %32, %20, %cst_13 {dimension_numbers = #tpu.dot_dimension_numbers<[2], [1], [1], [2], [0, 0, 0, 1, 1, 2], [0], [0]>} : vector<1x8x8xbf16>, vector<1x8x8xbf16>, vector<1x8x8xf32> -> vector<1x8x8xf32>
    "tpu.trace_stop"() : () -> ()
    %34 = vector.shape_cast %33 : vector<1x8x8xf32> to vector<8x8xf32>
    %35 = arith.truncf %34 : vector<8x8xf32> to vector<8x8xbf16>
    %c0_14 = arith.constant 0 : index
    %c0_15 = arith.constant 0 : index
    %c0_16 = arith.constant 0 : index
    %36 = vector.load %arg5[%c0_14, %c0_15, %c0_16] : memref<1x8x128xbf16, #tpu.memory_space<vmem>>, vector<1x8x128xbf16>
    %37 = vector.shape_cast %36 : vector<1x8x128xbf16> to vector<8x128xbf16>
    %cst_17 = arith.constant dense<0.000000e+00> : vector<8x128xf32>
    %38 = tpu.matmul %35, %37, %cst_17 {dimension_numbers = #tpu.dot_dimension_numbers<[1], [0], [0], [1], [0, 0, 1, 1], [], []>} : vector<8x8xbf16>, vector<8x128xbf16>, vector<8x128xf32> -> vector<8x128xf32>
    %c0_i32 = arith.constant 0 : i32
    %39 = arith.cmpi eq, %arg1, %c0_i32 : i32
    %40 = arith.extui %39 : i1 to i32
    %c0_i32_18 = arith.constant 0 : i32
    %41 = arith.cmpi ne, %40, %c0_i32_18 : i32
    scf.if %41 {
      %cst_24 = arith.constant 0.000000e+00 : f32
      %48 = vector.broadcast %cst_24 : f32 to vector<8x128xf32>
      %c0_25 = arith.constant 0 : index
      %c0_26 = arith.constant 0 : index
      %49 = vector.load %arg8[%c0_25, %c0_26] : memref<8x128xf32, #tpu.memory_space<vmem>>, vector<8x128xf32>
      tpu.vector_store %arg8[%c0_25, %c0_26], %48 {strides = array<i32>} : memref<8x128xf32, #tpu.memory_space<vmem>>, vector<8x128xf32>,
    } else {
    }
    %c0_19 = arith.constant 0 : index
    %c0_20 = arith.constant 0 : index
    %42 = vector.load %arg8[%c0_19, %c0_20] : memref<8x128xf32, #tpu.memory_space<vmem>>, vector<8x128xf32>
    %43 = arith.addf %42, %38 : vector<8x128xf32>
    %c0_21 = arith.constant 0 : index
    %c0_22 = arith.constant 0 : index
    %44 = vector.load %arg8[%c0_21, %c0_22] : memref<8x128xf32, #tpu.memory_space<vmem>>, vector<8x128xf32>
    tpu.vector_store %arg8[%c0_21, %c0_22], %43 {strides = array<i32>} : memref<8x128xf32, #tpu.memory_space<vmem>>, vector<8x128xf32>,
    %c3_i32 = arith.constant 3 : i32
    %45 = arith.cmpi eq, %arg1, %c3_i32 : i32
    %46 = arith.extui %45 : i1 to i32
    %c0_i32_23 = arith.constant 0 : i32
    %47 = arith.cmpi ne, %46, %c0_i32_23 : i32
    scf.if %47 {
      %c0_24 = arith.constant 0 : index
      %c0_25 = arith.constant 0 : index
      %48 = vector.load %arg8[%c0_24, %c0_25] : memref<8x128xf32, #tpu.memory_space<vmem>>, vector<8x128xf32>
      %c0_26 = arith.constant 0 : index
      %c0_27 = arith.constant 0 : index
      %49 = vector.load %arg6[%c0_26, %c0_27] : memref<1x128xf32, #tpu.memory_space<vmem>>, vector<1x128xf32>
      %50 = vector.broadcast %49 : vector<1x128xf32> to vector<8x128xf32>
      %51 = arith.addf %48, %50 : vector<8x128xf32>
      %52 = vector.shape_cast %51 : vector<8x128xf32> to vector<1x8x128xf32>
      %c0_28 = arith.constant 0 : index
      %c0_29 = arith.constant 0 : index
      %c0_30 = arith.constant 0 : index
      %53 = vector.load %arg7[%c0_28, %c0_29, %c0_30] : memref<1x8x128xf32, #tpu.memory_space<vmem>>, vector<1x8x128xf32>
      tpu.vector_store %arg7[%c0_28, %c0_29, %c0_30], %52 {strides = array<i32>} : memref<1x8x128xf32, #tpu.memory_space<vmem>>, vector<1x8x128xf32>,
    } else {
    }
    return
  }
  func.func @transform_0(%arg0: i32, %arg1: i32) -> (i32, i32, i32, i32) {
    %c0_i32 = arith.constant 0 : i32
    %c0_i32_0 = arith.constant 0 : i32
    %c0_i32_1 = arith.constant 0 : i32
    %c0_i32_2 = arith.constant 0 : i32
    return %c0_i32, %arg0, %c0_i32_0, %c0_i32_1 : i32, i32, i32, i32
  }
  func.func @transform_1(%arg0: i32, %arg1: i32) -> (i32, i32, i32) {
    %c0_i32 = arith.constant 0 : i32
    %c0_i32_0 = arith.constant 0 : i32
    %c0_i32_1 = arith.constant 0 : i32
    return %arg1, %c0_i32, %c0_i32_0 : i32, i32, i32
  }
  func.func @transform_2(%arg0: i32, %arg1: i32) -> (i32, i32, i32) {
    %c0_i32 = arith.constant 0 : i32
    %c0_i32_0 = arith.constant 0 : i32
    %c0_i32_1 = arith.constant 0 : i32
    return %arg1, %c0_i32, %c0_i32_0 : i32, i32, i32
  }
  func.func @transform_3(%arg0: i32, %arg1: i32) -> (i32, i32, i32) {
    %c0_i32 = arith.constant 0 : i32
    %c0_i32_0 = arith.constant 0 : i32
    %c0_i32_1 = arith.constant 0 : i32
    return %arg1, %c0_i32, %c0_i32_0 : i32, i32, i32
  }
  func.func @transform_4(%arg0: i32, %arg1: i32) -> (i32, i32) {
    %c0_i32 = arith.constant 0 : i32
    %c0_i32_0 = arith.constant 0 : i32
    %c0_i32_1 = arith.constant 0 : i32
    return %c0_i32, %c0_i32_0 : i32, i32
  }
  func.func @transform_5(%arg0: i32, %arg1: i32) -> (i32, i32, i32) {
    %c0_i32 = arith.constant 0 : i32
    %c0_i32_0 = arith.constant 0 : i32
    %c0_i32_1 = arith.constant 0 : i32
    return %arg0, %c0_i32, %c0_i32_0 : i32, i32, i32
  }
}

</mosaic_0001>

<llo_original>
// kernel: tpu_custom_call.1
$region0: #{tpu_custom_call.1}
  #allocation0 [shape = 'u32[]', space=smem, size = 0x4, offset = 0x4, fixed_abs, tag = 'smem constant byte address 0x4 - core index']
  #allocation1 [shape = 'u32[144,128]{1,0:T(1,128)}', space=vmem, size = 0x12000, scoped, tag = 'internal scratch']
  #allocation2 [shape = 'f32[8,128]{1,0:T(8,128)}', space=vmem, size = 0x1000, scoped, tag = 'scratch operand']
  %s0 = inlined_call_operand.vmem [shape: bf16[3,2,8,32], index: 0, kind: input, shape index: {}]
  %s1 = inlined_call_operand.vmem [shape: bf16[4,32,8], index: 1, kind: input, shape index: {}]
  %s2 = inlined_call_operand.vmem [shape: f32[4,1,8], index: 2, kind: input, shape index: {}]
  %s3 = inlined_call_operand.vmem [shape: bf16[4,8,128], index: 3, kind: input, shape index: {}]
  %s4 = inlined_call_operand.vmem [shape: f32[1,128], index: 4, kind: input, shape index: {}]
  %s5 = inlined_call_operand.hbm [shape: f32[2,8,128], index: 5, kind: output, shape index: {}]
  %s6 = sld [smem:[#allocation0]]
  $region102: #{tpu_custom_call.1} parent=0
    _
  %s8 = ssub.s32 1, %s6
  %s9 = scalar_select 0, %s8, %s6
  $region1: #{tpu_custom_call.1} parent=0
    #allocation3 [shape = 'u8[12288]{0}', space=vmem, size = 0x3000, scoped, tag = 'input window, operand 0']
    #allocation4 [shape = 'u8[8192]{0}', space=vmem, size = 0x2000, scoped, tag = 'output window, operand 0']
    #allocation5 [shape = 's32[2]{0}', space=sflag, size = 0x8, scoped, tag = 'scoped memory for tpu_custom_call.1']
    %10 = vsyncpa [#allocation5], 0
    %s11 = scalar_lea.sflag [#allocation5], 1
    %12 = vsyncpa %s11, 0
    loop: start=0, step=1, limit=10
    $region2: #{tpu_custom_call.1} parent=1 // loop_pre_header
      _
    $region3: #{tpu_custom_call.1} parent=1 // loop_header
      %s14 = sphi 0, %s18
      %p15 = scmp.ge.s32.totalorder %s14, 10
      %s21 = sphi 0, %s33
      %s22 = sphi 0, %s29
      %s23 = sphi 0, %s21
      %s24 = sphi 0, %s22
      %s25 = sphi 0, %s23
      %s26 = sphi 0, %s24
      %s36 = sphi 0, %s38
      %s39 = sphi 0, %s36
      %s40 = sphi 0, %s39
      %s56 = sphi 0, %s40
      %s62 = sphi 0, %s64
      %s65 = sphi 0, %s62
      %s66 = sphi 0, %s65
      %s82 = sphi 0, %s66
      %s88 = sphi 0, %s90
      %s91 = sphi 0, %s88
      %s92 = sphi 0, %s91
      %s108 = sphi 0, %s92
      %s114 = sphi 0, %s116
      %s117 = sphi 0, %s114
      %s118 = sphi 0, %s117
      %s134 = sphi 0, %s118
      %s138 = sphi 0, %s138
      %s140 = sphi 0, %s138
      %s141 = sphi 0, %s140
      %s155 = sphi 0, %s141
      %s161 = sphi 0, %s163
      %s164 = sphi 0, %s161
      %s165 = sphi 0, %s164
      %s181 = sphi 0, %s165
    $region4: #{tpu_custom_call.1} parent=1 // loop_header_branch
      %17 = sbr.rel (%p15) target = $region8
    $region5: #{tpu_custom_call.1} parent=1 // loop_body
      %s19 = ssub.s32 %s14, 1
      %s20 = ssub.s32 %s14, 2
      %s27 = sadd.s32 1, %s22
      %p28 = scmp.ge.s32.totalorder %s27, 4
      %s29 = scalar_select %p28, 0, %s27
      %s30 = sadd.s32 1, %s21
      %s31 = scalar_select %p28, %s30, %s21
      %p32 = scmp.ge.s32.totalorder %s31, 2
      %s33 = scalar_select %p32, 0, %s31
      %s34 = ssub.s32 %s21, %s33
      %p35 = scmp.eq.s32.totalorder %s34, 0
      %s37 = sadd.s32 %s36, 1
      %s38 = scalar_select %p35, %s36, %s37
      %p41 = pneg %p35
      %p42 = scmp.eq.s32.totalorder %s14, 7
      %p43 = por %p41, %p42
      %p44 = scmp.ne.s32.totalorder %s36, %s39
      %p45 = scmp.eq.s32.totalorder %s14, 0
      %p46 = por %p44, %p45
      %p47 = scmp.ne.s32.totalorder %s36, %s39
      %p48 = scmp.eq.s32.totalorder %s19, 7
      %p49 = por %p47, %p48
      %p50 = scmp.ne.s32.totalorder %s39, %s40
      %p51 = scmp.eq.s32.totalorder %s19, 0
      %p52 = por %p50, %p51
      %p53 = scmp.ne.s32.totalorder %s39, %s40
      %p54 = scmp.eq.s32.totalorder %s20, 7
      %p55 = por %p53, %p54
      %p57 = scmp.ne.s32.totalorder %s40, %s56
      %p58 = scmp.eq.s32.totalorder %s20, 0
      %p59 = por %p57, %p58
      %s60 = ssub.s32 %s22, %s29
      %p61 = scmp.eq.s32.totalorder %s60, 0
      %s63 = sadd.s32 %s62, 1
      %s64 = scalar_select %p61, %s62, %s63
      %p67 = pneg %p61
      %p68 = scmp.eq.s32.totalorder %s14, 7
      %p69 = por %p67, %p68
      %p70 = scmp.ne.s32.totalorder %s62, %s65
      %p71 = scmp.eq.s32.totalorder %s14, 0
      %p72 = por %p70, %p71
      %p73 = scmp.ne.s32.totalorder %s62, %s65
      %p74 = scmp.eq.s32.totalorder %s19, 7
      %p75 = por %p73, %p74
      %p76 = scmp.ne.s32.totalorder %s65, %s66
      %p77 = scmp.eq.s32.totalorder %s19, 0
      %p78 = por %p76, %p77
      %p79 = scmp.ne.s32.totalorder %s65, %s66
      %p80 = scmp.eq.s32.totalorder %s20, 7
      %p81 = por %p79, %p80
      %p83 = scmp.ne.s32.totalorder %s66, %s82
      %p84 = scmp.eq.s32.totalorder %s20, 0
      %p85 = por %p83, %p84
      %s86 = ssub.s32 %s22, %s29
      %p87 = scmp.eq.s32.totalorder %s86, 0
      %s89 = sadd.s32 %s88, 1
      %s90 = scalar_select %p87, %s88, %s89
      %p93 = pneg %p87
      %p94 = scmp.eq.s32.totalorder %s14, 7
      %p95 = por %p93, %p94
      %p96 = scmp.ne.s32.totalorder %s88, %s91
      %p97 = scmp.eq.s32.totalorder %s14, 0
      %p98 = por %p96, %p97
      %p99 = scmp.ne.s32.totalorder %s88, %s91
      %p100 = scmp.eq.s32.totalorder %s19, 7
      %p101 = por %p99, %p100
      %p102 = scmp.ne.s32.totalorder %s91, %s92
      %p103 = scmp.eq.s32.totalorder %s19, 0
      %p104 = por %p102, %p103
      %p105 = scmp.ne.s32.totalorder %s91, %s92
      %p106 = scmp.eq.s32.totalorder %s20, 7
      %p107 = por %p105, %p106
      %p109 = scmp.ne.s32.totalorder %s92, %s108
      %p110 = scmp.eq.s32.totalorder %s20, 0
      %p111 = por %p109, %p110
      %s112 = ssub.s32 %s22, %s29
      %p113 = scmp.eq.s32.totalorder %s112, 0
      %s115 = sadd.s32 %s114, 1
      %s116 = scalar_select %p113, %s114, %s115
      %p119 = pneg %p113
      %p120 = scmp.eq.s32.totalorder %s14, 7
      %p121 = por %p119, %p120
      %p122 = scmp.ne.s32.totalorder %s114, %s117
      %p123 = scmp.eq.s32.totalorder %s14, 0
      %p124 = por %p122, %p123
      %p125 = scmp.ne.s32.totalorder %s114, %s117
      %p126 = scmp.eq.s32.totalorder %s19, 7
      %p127 = por %p125, %p126
      %p128 = scmp.ne.s32.totalorder %s117, %s118
      %p129 = scmp.eq.s32.totalorder %s19, 0
      %p130 = por %p128, %p129
      %p131 = scmp.ne.s32.totalorder %s117, %s118
      %p132 = scmp.eq.s32.totalorder %s20, 7
      %p133 = por %p131, %p132
      %p135 = scmp.ne.s32.totalorder %s118, %s134
      %p136 = scmp.eq.s32.totalorder %s20, 0
      %p137 = por %p135, %p136
      %s139 = sadd.s32 %s138, 1
      %p142 = scmp.eq.s32.totalorder %s14, 7
      %p143 = scmp.ne.s32.totalorder %s138, %s140
      %p144 = scmp.eq.s32.totalorder %s14, 0
      %p145 = por %p143, %p144
      %p146 = scmp.ne.s32.totalorder %s138, %s140
      %p147 = scmp.eq.s32.totalorder %s19, 7
      %p148 = por %p146, %p147
      %p149 = scmp.ne.s32.totalorder %s140, %s141
      %p150 = scmp.eq.s32.totalorder %s19, 0
      %p151 = por %p149, %p150
      %p152 = scmp.ne.s32.totalorder %s140, %s141
      %p153 = scmp.eq.s32.totalorder %s20, 7
      %p154 = por %p152, %p153
      %p156 = scmp.ne.s32.totalorder %s141, %s155
      %p157 = scmp.eq.s32.totalorder %s20, 0
      %p158 = por %p156, %p157
      %s159 = ssub.s32 %s21, %s33
      %p160 = scmp.eq.s32.totalorder %s159, 0
      %s162 = sadd.s32 %s161, 1
      %s163 = scalar_select %p160, %s161, %s162
      %p166 = pneg %p160
      %p167 = scmp.eq.s32.totalorder %s14, 7
      %p168 = por %p166, %p167
      %p169 = scmp.ne.s32.totalorder %s161, %s164
      %p170 = scmp.eq.s32.totalorder %s14, 0
      %p171 = por %p169, %p170
      %p172 = scmp.ne.s32.totalorder %s161, %s164
      %p173 = scmp.eq.s32.totalorder %s19, 7
      %p174 = por %p172, %p173
      %p175 = scmp.ne.s32.totalorder %s164, %s165
      %p176 = scmp.eq.s32.totalorder %s19, 0
      %p177 = por %p175, %p176
      %p178 = scmp.ne.s32.totalorder %s164, %s165
      %p179 = scmp.eq.s32.totalorder %s20, 7
      %p180 = por %p178, %p179
      %p182 = scmp.ne.s32.totalorder %s165, %s181
      %p183 = scmp.eq.s32.totalorder %s20, 0
      %p184 = por %p182, %p183
      %p185 = scmp.le.s32.totalorder 1, %s14
      %p186 = scmp.lt.s32.totalorder %s14, 9
      %p187 = pnand %p185, %p186
      %p188 = pneg %p187
      // Predicated region
      $region9: #{tpu_custom_call.1} parent=5 // pred_check
        _
      $region10: #{tpu_custom_call.1} parent=5 // pred_check_branch
        %190 = sbr.rel (%p187) target = $region12
      $region11: #{tpu_custom_call.1} parent=5 // pred_region
        %s191 = ssub.s32 %s14, 1
        // Predicated region
        $region13: #{tpu_custom_call.1} parent=11 // pred_check
          %p192 = pneg %p151
        $region14: #{tpu_custom_call.1} parent=11 // pred_check_branch
          %194 = sbr.rel (%p192) target = $region16
        $region15: #{tpu_custom_call.1} parent=11 // pred_region
          _
        $region16: #{tpu_custom_call.1} parent=11 // pred_fallthru
          _
      $region12: #{tpu_custom_call.1} parent=5 // pred_fallthru
        _
      %p195 = scmp.lt.s32.totalorder %s14, 8
      // Predicated region
      $region17: #{tpu_custom_call.1} parent=5 // pred_check
        %p196 = pneg %p195
      $region18: #{tpu_custom_call.1} parent=5 // pred_check_branch
        %198 = sbr.rel (%p196) target = $region20
      $region19: #{tpu_custom_call.1} parent=5 // pred_region
        // Predicated region
        $region21: #{tpu_custom_call.1} parent=19 // pred_check
          %p199 = pneg %p46
        $region22: #{tpu_custom_call.1} parent=19 // pred_check_branch
          %201 = sbr.rel (%p199) target = $region24
        $region23: #{tpu_custom_call.1} parent=19 // pred_region
          %s202 = sand.u32 %s36, 1
          %s203 = sand.u32 %s36, 1
          %s204 = smul.addr %s203, 12
          %s205 = scalar_lea.vmem [#allocation3], %s204
          %s206 = smul.addr %s21, 4
          %s207 = scalar_lea.vmem %s0, %s206
          // Predicated region
          $region25: #{tpu_custom_call.1} parent=23 // pred_check
            _
          $region26: #{tpu_custom_call.1} parent=23 // pred_check_branch
            %209 = sbr.rel (0) target = $region28
          $region27: #{tpu_custom_call.1} parent=23 // pred_region
            // Predicated region
            $region29: #{tpu_custom_call.1} parent=27 // pred_check
              _
            $region30: #{tpu_custom_call.1} parent=27 // pred_check_branch
              %211 = sbr.rel target = $region32
            $region31: #{tpu_custom_call.1} parent=27 // pred_region
              // Predicated region
              $region44: #{tpu_custom_call.1} parent=31 // pred_check
                _
              $region45: #{tpu_custom_call.1} parent=31 // pred_check_branch
                %230 = sbr.rel (0) target = $region47
              $region46: #{tpu_custom_call.1} parent=31 // pred_region
                loop: start=0, step=1, limit=1
                $region48: #{tpu_custom_call.1} parent=46 // loop_pre_header
                  _
                $region49: #{tpu_custom_call.1} parent=46 // loop_header
                  %s232 = sphi 0, %s236
                  %p233 = scmp.ge.s32.totalorder %s232, 1
                  %s237 = sphi %s207, %s207
                  %s238 = sphi %s205, %s205
                $region50: #{tpu_custom_call.1} parent=46 // loop_header_branch
                  %235 = sbr.rel (%p233) target = $region54
                $region51: #{tpu_custom_call.1} parent=46 // loop_body
                  _
                $region52: #{tpu_custom_call.1} parent=46 // loop_footer
                  %s236 = sadd.s32 1, %s232
                $region53: #{tpu_custom_call.1} parent=46 // loop_footer_branch
                  %231 = sbr.rel target = $region49
                $region54: #{tpu_custom_call.1} parent=46 // loop_exit
                  _
                loop: start=0, step=1, limit=1
                $region55: #{tpu_custom_call.1} parent=46 // loop_pre_header
                  _
                $region56: #{tpu_custom_call.1} parent=46 // loop_header
                  %s241 = sphi 0, %s245
                  %p242 = scmp.ge.s32.totalorder %s241, 1
                  %s246 = sphi %s207, %s207
                  %s247 = sphi %s205, %s205
                $region57: #{tpu_custom_call.1} parent=46 // loop_header_branch
                  %244 = sbr.rel (%p242) target = $region61
                $region58: #{tpu_custom_call.1} parent=46 // loop_body
                  %v248 = vld [vmem:[%s246] sm:$0xf]
                  %249 = vst [vmem:[%s247] sm:$0xf] %v248
                  %v250 = vld [vmem:[%s246 + $0x8] sm:$0xf]
                  %251 = vst [vmem:[%s247 + $0x4] sm:$0xf] %v250
                  %v252 = vld [vmem:[%s246 + $0x10] sm:$0xf]
                  %253 = vst [vmem:[%s247 + $0x8] sm:$0xf] %v252
                $region59: #{tpu_custom_call.1} parent=46 // loop_footer
                  %s245 = sadd.s32 1, %s241
                $region60: #{tpu_custom_call.1} parent=46 // loop_footer_branch
                  %240 = sbr.rel target = $region56
                $region61: #{tpu_custom_call.1} parent=46 // loop_exit
                  _
              $region47: #{tpu_custom_call.1} parent=31 // pred_fallthru
                _
            $region32: #{tpu_custom_call.1} parent=27 // pred_fallthru
              _
            // Predicated region
            $region33: #{tpu_custom_call.1} parent=27 // pred_check
              _
            $region34: #{tpu_custom_call.1} parent=27 // pred_check_branch
              %213 = sbr.rel (0) target = $region36
            $region35: #{tpu_custom_call.1} parent=27 // pred_region
              loop: start=0, step=1, limit=1
              $region37: #{tpu_custom_call.1} parent=35 // loop_pre_header
                _
              $region38: #{tpu_custom_call.1} parent=35 // loop_header
                %s216 = sphi 0, %s220
                %p217 = scmp.ge.s32.totalorder %s216, 1
                %s221 = sphi %s207, %s207
                %s222 = sphi %s205, %s205
              $region39: #{tpu_custom_call.1} parent=35 // loop_header_branch
                %219 = sbr.rel (%p217) target = $region43
              $region40: #{tpu_custom_call.1} parent=35 // loop_body
                %v223 = vld [vmem:[%s221] sm:$0xf]
                %224 = vst [vmem:[%s222] sm:$0xf] %v223
                %v225 = vld [vmem:[%s221 + $0x8] sm:$0xf]
                %226 = vst [vmem:[%s222 + $0x4] sm:$0xf] %v225
                %v227 = vld [vmem:[%s221 + $0x10] sm:$0xf]
                %228 = vst [vmem:[%s222 + $0x8] sm:$0xf] %v227
              $region41: #{tpu_custom_call.1} parent=35 // loop_footer
                %s220 = sadd.s32 1, %s216
              $region42: #{tpu_custom_call.1} parent=35 // loop_footer_branch
                %215 = sbr.rel target = $region38
              $region43: #{tpu_custom_call.1} parent=35 // loop_exit
                _
            $region36: #{tpu_custom_call.1} parent=27 // pred_fallthru
              _
          $region28: #{tpu_custom_call.1} parent=23 // pred_fallthru
            _
          %254 = vnop
        $region24: #{tpu_custom_call.1} parent=19 // pred_fallthru
          _
        // Predicated region
        $region62: #{tpu_custom_call.1} parent=19 // pred_check
          %p255 = pneg %p72
        $region63: #{tpu_custom_call.1} parent=19 // pred_check_branch
          %257 = sbr.rel (%p255) target = $region65
        $region64: #{tpu_custom_call.1} parent=19 // pred_region
          %p258 = scmp.lt.s32.totalorder %s22, 3
          %s259 = scalar_select %p258, %s22, 3
          %s260 = smul.addr %s259, 4
          %s261 = smul.addr %s260, 4
          %s262 = scalar_lea.vmem %s1, %s261
        $region65: #{tpu_custom_call.1} parent=19 // pred_fallthru
          _
        // Predicated region
        $region66: #{tpu_custom_call.1} parent=19 // pred_check
          %p263 = pneg %p98
        $region67: #{tpu_custom_call.1} parent=19 // pred_check_branch
          %265 = sbr.rel (%p263) target = $region69
        $region68: #{tpu_custom_call.1} parent=19 // pred_region
          %p266 = scmp.lt.s32.totalorder %s22, 3
          %s267 = scalar_select %p266, %s22, 3
          %s268 = scalar_lea.vmem %s2, %s267
        $region69: #{tpu_custom_call.1} parent=19 // pred_fallthru
          _
        // Predicated region
        $region70: #{tpu_custom_call.1} parent=19 // pred_check
          %p269 = pneg %p124
        $region71: #{tpu_custom_call.1} parent=19 // pred_check_branch
          %271 = sbr.rel (%p269) target = $region73
        $region72: #{tpu_custom_call.1} parent=19 // pred_region
          %p272 = scmp.lt.s32.totalorder %s22, 3
          %s273 = scalar_select %p272, %s22, 3
          %s274 = smul.addr %s273, 4
          %s275 = scalar_lea.vmem %s3, %s274
        $region73: #{tpu_custom_call.1} parent=19 // pred_fallthru
          _
      $region20: #{tpu_custom_call.1} parent=5 // pred_fallthru
        _
      %p276 = scmp.le.s32.totalorder 1, %s14
      %p277 = scmp.lt.s32.totalorder %s14, 9
      %p278 = pnand %p276, %p277
      %p279 = pneg %p278
      // Predicated region
      $region74: #{tpu_custom_call.1} parent=5 // pred_check
        _
      $region75: #{tpu_custom_call.1} parent=5 // pred_check_branch
        %281 = sbr.rel (%p278) target = $region77
      $region76: #{tpu_custom_call.1} parent=5 // pred_region
        %s282 = ssub.s32 %s14, 1
        %s283 = sand.u32 %s39, 1
        %s284 = sand.u32 %s39, 1
        %s285 = smul.addr %s284, 12
        %s286 = scalar_lea.vmem [#allocation3], %s285
        // Predicated region
        $region78: #{tpu_custom_call.1} parent=76 // pred_check
          %p287 = pneg %p52
        $region79: #{tpu_custom_call.1} parent=76 // pred_check_branch
          %289 = sbr.rel (%p287) target = $region81
        $region80: #{tpu_custom_call.1} parent=76 // pred_region
          _
        $region81: #{tpu_custom_call.1} parent=76 // pred_fallthru
          _
        %s290 = sand.u32 %s39, 1
        %s291 = sand.u32 %s39, 1
        %s292 = smul.addr %s291, 12
        %s293 = scalar_lea.vmem [#allocation3], %s292
        %p294 = pneg %p52
        %p295 = pneg %p49
        %p296 = scmp.lt.s32.totalorder %s24, 3
        %s297 = scalar_select %p296, %s24, 3
        %s298 = smul.addr %s297, 4
        %s299 = smul.addr %s298, 4
        %s300 = scalar_lea.vmem %s1, %s299
        %p301 = pneg %p78
        %p302 = pneg %p75
        %p303 = scmp.lt.s32.totalorder %s24, 3
        %s304 = scalar_select %p303, %s24, 3
        %s305 = scalar_lea.vmem %s2, %s304
        %p306 = pneg %p104
        %p307 = pneg %p101
        %p308 = scmp.lt.s32.totalorder %s24, 3
        %s309 = scalar_select %p308, %s24, 3
        %s310 = smul.addr %s309, 4
        %s311 = scalar_lea.vmem %s3, %s310
        %p312 = pneg %p130
        %p313 = pneg %p127
        %p314 = pneg %p151
        %p315 = pneg %p148
        %p316 = pneg %p177
        %p317 = pneg %p174
        %s318 = sand.u32 %s164, 1
        %s319 = scalar_lea.sflag [#allocation5], %s318
        %s320 = sand.u32 %s164, 1
        %s321 = smul.addr %s320, 8
        %s322 = scalar_lea.vmem [#allocation4], %s321
        %p323 = scmp.lt.s32.totalorder %s24, 3
        %s324 = scalar_select %p323, %s24, 3
        %s325 = smul.addr %s324, 4
        %s326 = smul.addr %s325, 4
        %s327 = scalar_lea.vmem %s1, %s326
        %p328 = scmp.lt.s32.totalorder %s24, 3
        %s329 = scalar_select %p328, %s24, 3
        %s330 = scalar_lea.vmem %s2, %s329
        %p331 = scmp.lt.s32.totalorder %s24, 3
        %s332 = scalar_select %p331, %s24, 3
        %s333 = smul.addr %s332, 4
        %s334 = scalar_lea.vmem %s3, %s333
        %v336 = vld [vmem:[%s286] sm:$0xf]
        %v337 = vld [vmem:[%s286 + $0x4] sm:$0xf]
        %v338 = vld [vmem:[%s286 + $0x8] sm:$0xf]
        %v339 = vld [vmem:[%s327] sm:$0xf]
        %v340 = vld [vmem:[%s327 + $0x4] sm:$0xf]
        %v341 = vld [vmem:[%s327 + $0x8] sm:$0xf]
        %v342 = vld [vmem:[%s327 + $0xc] sm:$0xf]
        %v343 = vld [vmem:[%s330] sm:$0x1]
        %v345 = vlaneseq
        %v346 = vshrl.u32 %v345, 7
        %v347 = vsub.s32 0, %v346
        %v348 = vrot.slane %v343, %v347
        %v353 = vunpack.c.l.b16 %v336
        %v354 = vunpack.c.l.b16 %v337
        %v355 = vunpack.c.l.b16 %v338
        %v356 = vpack.c.b16 %v354, %v353
        %v357 = vpack.c.b16 %v355, %v355
        %v362 = vunpack.c.l.b16 %v339
        %v363 = vunpack.c.l.b16 %v340
        %v364 = vunpack.c.l.b16 %v341
        %v365 = vunpack.c.l.b16 %v342
        %v366 = vpack.c.b16 %v363, %v362
        %v367 = vpack.c.b16 %v365, %v364
        %vm370 = vcmask 261120
        %v372 = vsel %vm370, %v356, 0
        %v375 = vsel %vm370, %v357, 0
        %377 = vmatprep.subr.bf16.mxu0 0
        %378 = vmatpush1.bf16.msra.mxu0 %v366
        %379 = vmatprep.subr.bf16.mxu0 0
        %380 = vmatpush1.bf16.msra.mxu0 %v367
        %381 = vmatprep.subr.bf16.mxu0 0
        %382 = vmatpush1.bf16.msra.mxu0 0
        %383 = vmatprep.subr.bf16.mxu0 0
        %384 = vmatpush1.bf16.msra.mxu0 0
        %385 = vmatprep.subr.bf16.mxu0 0
        %386 = vmatpush1.bf16.msra.mxu0 0
        %387 = vmatprep.subr.bf16.mxu0 0
        %388 = vmatpush1.bf16.msra.mxu0 0
        %389 = vmatprep.subr.bf16.mxu0 0
        %390 = vmatpush1.bf16.msra.mxu0 0
        %391 = vmatprep.subr.bf16.mxu0 0
        %392 = vmatpush1.bf16.msra.mxu0 0
        %393 = vmatprep.subr.bf16.mxu0 0
        %394 = vmatpush1.bf16.msra.mxu0 0
        %395 = vmatprep.subr.bf16.mxu0 0
        %396 = vmatpush1.bf16.msra.mxu0 0
        %397 = vmatprep.subr.bf16.mxu0 0
        %398 = vmatpush1.bf16.msra.mxu0 0
        %399 = vmatprep.subr.bf16.mxu0 0
        %400 = vmatpush1.bf16.msra.mxu0 0
        %401 = vmatprep.subr.bf16.mxu0 0
        %402 = vmatpush1.bf16.msra.mxu0 0
        %403 = vmatprep.subr.bf16.mxu0 0
        %404 = vmatpush1.bf16.msra.mxu0 0
        %405 = vmatprep.subr.bf16.mxu0 0
        %406 = vmatpush1.bf16.msra.mxu0 0
        %407 = vmatprep.subr.bf16.mxu0 0
        %408 = vmatpush1.bf16.msra.mxu0 0
        %409 = vmatprep.mubr.bf16.mxu0 0
        %410 = vmatmul.mubr.bf16.gmra.mrb[0].mxu0 %v372
        %v411 = vpop.f32.mrb[0].mxu0
        %v412 = vadd.f32 %v348, %v411
        %v413 = vpop.f32.mrb[0].mxu0
        %v414 = vpop.f32.mrb[0].mxu0
        %v415 = vadd.f32 %v348, %v414
        %v416 = vpop.f32.mrb[0].mxu0
        %417 = vmatprep.mubr.bf16.mxu0 0
        %418 = vmatmul.mubr.bf16.gmra.mrb[0].mxu0 %v375
        %v419 = vpop.f32.mrb[0].mxu0
        %v420 = vadd.f32 %v348, %v419
        %v421 = vpop.f32.mrb[0].mxu0
        %v422 = vpop.f32.mrb[0].mxu0
        %v423 = vpop.f32.mrb[0].mxu0
        %424 = vdwg.mxu0
        %v425 = vmul.f32 %v412, 0.35355338
        %v426 = vpack.c.bf16 %v425, %v425
        %v427 = vpack.c.bf16 %v415, %v415
        %v428 = vpack.c.bf16 %v420, %v420
        %vm429 = vcmask 64512
        %v431 = vsel %vm429, %v426, 0
        %v434 = vsel %vm429, %v427, 0
        %436 = vmatprep.subr.bf16.mxu0 0
        %437 = vmatpush1.bf16.xpose.msra.mxu0 %v434
        %438 = vmatprep.subr.bf16.mxu0 0
        %439 = vmatpush1.bf16.xpose.msra.mxu0 0
        %440 = vmatprep.subr.bf16.mxu0 0
        %441 = vmatpush1.bf16.xpose.msra.mxu0 0
        %442 = vmatprep.subr.bf16.mxu0 0
        %443 = vmatpush1.bf16.xpose.msra.mxu0 0
        %444 = vmatprep.subr.bf16.mxu0 0
        %445 = vmatpush1.bf16.xpose.msra.mxu0 0
        %446 = vmatprep.subr.bf16.mxu0 0
        %447 = vmatpush1.bf16.xpose.msra.mxu0 0
        %448 = vmatprep.subr.bf16.mxu0 0
        %449 = vmatpush1.bf16.xpose.msra.mxu0 0
        %450 = vmatprep.subr.bf16.mxu0 0
        %451 = vmatpush1.bf16.xpose.msra.mxu0 0
        %452 = vmatprep.subr.bf16.mxu0 0
        %453 = vmatpush1.bf16.xpose.msra.mxu0 0
        %454 = vmatprep.subr.bf16.mxu0 0
        %455 = vmatpush1.bf16.xpose.msra.mxu0 0
        %456 = vmatprep.subr.bf16.mxu0 0
        %457 = vmatpush1.bf16.xpose.msra.mxu0 0
        %458 = vmatprep.subr.bf16.mxu0 0
        %459 = vmatpush1.bf16.xpose.msra.mxu0 0
        %460 = vmatprep.subr.bf16.mxu0 0
        %461 = vmatpush1.bf16.xpose.msra.mxu0 0
        %462 = vmatprep.subr.bf16.mxu0 0
        %463 = vmatpush1.bf16.xpose.msra.mxu0 0
        %464 = vmatprep.subr.bf16.mxu0 0
        %465 = vmatpush1.bf16.xpose.msra.mxu0 0
        %466 = vmatprep.subr.bf16.mxu0 0
        %467 = vmatpush1.bf16.xpose.msra.mxu0 0
        %468 = vmatprep.mubr.bf16.mxu0 0
        %469 = vmatmul.mubr.bf16.gmra.mrb[0].mxu0 %v431
        %v470 = vpop.f32.mrb[0].mxu0
        %v471 = vadd.f32 0.0, %v470
        %v472 = vpop.f32.mrb[0].mxu0
        %v473 = vpop.f32.mrb[0].mxu0
        %v474 = vpop.f32.mrb[0].mxu0
        %475 = vdwg.mxu0
        %v476 = vsel %vm429, %v471, -inf
        %477 = vmax.xlane.f32.xlu0 %v476
        %v478 = vpop.xlane.xlu0 %477
        %v479 = vsub.f32 %v471, %v478
        %v480 = vmul.f32 %v479, 1.442695
        %v481 = vpow.pop %v480
        %v482 = vsel %vm429, %v481, 0.0
        %483 = vadd.xlane.f32.xlu0 %v482
        %v484 = vpop.xlane.xlu0 %483
        %v485 = vrcp.pop %v484
        %v486 = vmul.f32 %v481, %v485
        %v487 = vpack.c.bf16 %v486, %v486
        %v489 = vsel %vm429, %v487, 0
        %vm491 = vcmask 1043456
        %v493 = vsel %vm491, %v428, 0
        %495 = vmatprep.subr.bf16.mxu0 0
        %496 = vmatpush1.bf16.msra.mxu0 %v493
        %497 = vmatprep.subr.bf16.mxu0 0
        %498 = vmatpush1.bf16.msra.mxu0 0
        %499 = vmatprep.subr.bf16.mxu0 0
        %500 = vmatpush1.bf16.msra.mxu0 0
        %501 = vmatprep.subr.bf16.mxu0 0
        %502 = vmatpush1.bf16.msra.mxu0 0
        %503 = vmatprep.subr.bf16.mxu0 0
        %504 = vmatpush1.bf16.msra.mxu0 0
        %505 = vmatprep.subr.bf16.mxu0 0
        %506 = vmatpush1.bf16.msra.mxu0 0
        %507 = vmatprep.subr.bf16.mxu0 0
        %508 = vmatpush1.bf16.msra.mxu0 0
        %509 = vmatprep.subr.bf16.mxu0 0
        %510 = vmatpush1.bf16.msra.mxu0 0
        %511 = vmatprep.subr.bf16.mxu0 0
        %512 = vmatpush1.bf16.msra.mxu0 0
        %513 = vmatprep.subr.bf16.mxu0 0
        %514 = vmatpush1.bf16.msra.mxu0 0
        %515 = vmatprep.subr.bf16.mxu0 0
        %516 = vmatpush1.bf16.msra.mxu0 0
        %517 = vmatprep.subr.bf16.mxu0 0
        %518 = vmatpush1.bf16.msra.mxu0 0
        %519 = vmatprep.subr.bf16.mxu0 0
        %520 = vmatpush1.bf16.msra.mxu0 0
        %521 = vmatprep.subr.bf16.mxu0 0
        %522 = vmatpush1.bf16.msra.mxu0 0
        %523 = vmatprep.subr.bf16.mxu0 0
        %524 = vmatpush1.bf16.msra.mxu0 0
        %525 = vmatprep.subr.bf16.mxu0 0
        %526 = vmatpush1.bf16.msra.mxu0 0
        %527 = vmatprep.mubr.bf16.mxu0 0
        %528 = vmatmul.mubr.bf16.gmra.mrb[0].mxu0 %v489
        %v529 = vpop.f32.mrb[0].mxu0
        %v530 = vadd.f32 0.0, %v529
        %v531 = vpop.f32.mrb[0].mxu0
        %v532 = vpop.f32.mrb[0].mxu0
        %v533 = vpop.f32.mrb[0].mxu0
        %534 = vdwg.mxu0
        %v535 = vpack.c.bf16 %v530, %v530
        %v536 = vld [vmem:[%s334] sm:$0xf]
        %v538 = vsel %vm429, %v535, 0
        %v541 = vsel %vm491, %v536, 0
        %543 = vmatprep.subr.bf16.mxu0 0
        %544 = vmatpush1.bf16.msra.mxu0 %v541
        %545 = vmatprep.subr.bf16.mxu0 0
        %546 = vmatpush1.bf16.msra.mxu0 0
        %547 = vmatprep.subr.bf16.mxu0 0
        %548 = vmatpush1.bf16.msra.mxu0 0
        %549 = vmatprep.subr.bf16.mxu0 0
        %550 = vmatpush1.bf16.msra.mxu0 0
        %551 = vmatprep.subr.bf16.mxu0 0
        %552 = vmatpush1.bf16.msra.mxu0 0
        %553 = vmatprep.subr.bf16.mxu0 0
        %554 = vmatpush1.bf16.msra.mxu0 0
        %555 = vmatprep.subr.bf16.mxu0 0
        %556 = vmatpush1.bf16.msra.mxu0 0
        %557 = vmatprep.subr.bf16.mxu0 0
        %558 = vmatpush1.bf16.msra.mxu0 0
        %559 = vmatprep.subr.bf16.mxu0 0
        %560 = vmatpush1.bf16.msra.mxu0 0
        %561 = vmatprep.subr.bf16.mxu0 0
        %562 = vmatpush1.bf16.msra.mxu0 0
        %563 = vmatprep.subr.bf16.mxu0 0
        %564 = vmatpush1.bf16.msra.mxu0 0
        %565 = vmatprep.subr.bf16.mxu0 0
        %566 = vmatpush1.bf16.msra.mxu0 0
        %567 = vmatprep.subr.bf16.mxu0 0
        %568 = vmatpush1.bf16.msra.mxu0 0
        %569 = vmatprep.subr.bf16.mxu0 0
        %570 = vmatpush1.bf16.msra.mxu0 0
        %571 = vmatprep.subr.bf16.mxu0 0
        %572 = vmatpush1.bf16.msra.mxu0 0
        %573 = vmatprep.subr.bf16.mxu0 0
        %574 = vmatpush1.bf16.msra.mxu0 0
        %575 = vmatprep.mubr.bf16.mxu0 0
        %576 = vmatmul.mubr.bf16.gmra.mrb[0].mxu0 %v538
        %v577 = vpop.f32.mrb[0].mxu0
        %v578 = vadd.f32 0.0, %v577
        %v579 = vpop.f32.mrb[0].mxu0
        %v580 = vpop.f32.mrb[0].mxu0
        %v581 = vpop.f32.mrb[0].mxu0
        %582 = vdwg.mxu0
        %p583 = scmp.eq.s32.totalorder %s24, 0
        // Predicated region
        $region82: #{tpu_custom_call.1} parent=76 // pred_check
          %p584 = pneg %p583
        $region83: #{tpu_custom_call.1} parent=76 // pred_check_branch
          %586 = sbr.rel (%p584) target = $region85
        $region84: #{tpu_custom_call.1} parent=76 // pred_region
          %587 = vst [vmem:[#allocation2] sm:$0xff] 0.0
        $region85: #{tpu_custom_call.1} parent=76 // pred_fallthru
          _
        %v588 = vld [vmem:[#allocation2] sm:$0xff]
        %v589 = vadd.f32 %v588, %v578
        %590 = vst [vmem:[#allocation2] sm:$0xff] %v589
        %p591 = scmp.eq.s32.totalorder %s24, 3
        // Predicated region
        $region86: #{tpu_custom_call.1} parent=76 // pred_check
          %p592 = pneg %p591
        $region87: #{tpu_custom_call.1} parent=76 // pred_check_branch
          %594 = sbr.rel (%p592) target = $region89
        $region88: #{tpu_custom_call.1} parent=76 // pred_region
          %v595 = vld [vmem:[#allocation2] sm:$0xff]
          %v596 = vld [vmem:[%s4] sm:$0x1]
          %v598 = vlaneseq
          %v599 = vshrl.u32 %v598, 7
          %v600 = vsub.s32 0, %v599
          %v601 = vrot.slane %v596, %v600
          %v603 = vadd.f32 %v595, %v601
          %604 = vst [vmem:[%s322] sm:$0xff] %v603
        $region89: #{tpu_custom_call.1} parent=76 // pred_fallthru
          _
        %s605 = sand.u32 %s164, 1
        %s606 = scalar_lea.sflag [#allocation5], %s605
        %s607 = sand.u32 %s164, 1
        %s608 = smul.addr %s607, 8
        %s609 = scalar_lea.vmem [#allocation4], %s608
        // Predicated region
        $region90: #{tpu_custom_call.1} parent=76 // pred_check
          %p610 = pneg %p174
        $region91: #{tpu_custom_call.1} parent=76 // pred_check_branch
          %612 = sbr.rel (%p610) target = $region93
        $region92: #{tpu_custom_call.1} parent=76 // pred_region
          %s614 = ssub.s32 128, 128
          %615 = vsyncadd %s606, %s614
          %s616 = smul.addr %s23, 128
          %s617 = scalar_lea.hbm %s5, %s616
          %s619 = sshll.u32 %s609, 4
          %s620 = int_to_ptr.vmem [resolvable:$true] %s619
          %622 = dma.vmem_to_hbm [thread:$0]  %s620, 128, %s617, %s606
        $region93: #{tpu_custom_call.1} parent=76 // pred_fallthru
          _
      $region77: #{tpu_custom_call.1} parent=5 // pred_fallthru
        _
      %p623 = scmp.le.s32.totalorder 2, %s14
      // Predicated region
      $region94: #{tpu_custom_call.1} parent=5 // pred_check
        %p624 = pneg %p623
      $region95: #{tpu_custom_call.1} parent=5 // pred_check_branch
        %626 = sbr.rel (%p624) target = $region97
      $region96: #{tpu_custom_call.1} parent=5 // pred_region
        %s627 = ssub.s32 %s14, 2
        // Predicated region
        $region98: #{tpu_custom_call.1} parent=96 // pred_check
          %p628 = pneg %p180
        $region99: #{tpu_custom_call.1} parent=96 // pred_check_branch
          %630 = sbr.rel (%p628) target = $region101
        $region100: #{tpu_custom_call.1} parent=96 // pred_region
          %s631 = sand.u32 %s165, 1
          %s632 = scalar_lea.sflag [#allocation5], %s631
          %s633 = sand.u32 %s165, 1
          %s634 = smul.addr %s633, 8
          %s635 = scalar_lea.vmem [#allocation4], %s634
          %636 = dma.done %s632, 128
        $region101: #{tpu_custom_call.1} parent=96 // pred_fallthru
          _
      $region97: #{tpu_custom_call.1} parent=5 // pred_fallthru
        _
    $region6: #{tpu_custom_call.1} parent=1 // loop_footer
      %s18 = sadd.s32 1, %s14
    $region7: #{tpu_custom_call.1} parent=1 // loop_footer_branch
      %13 = sbr.rel target = $region3
    $region8: #{tpu_custom_call.1} parent=1 // loop_exit
      _
    %637 = vsyncpa [#allocation5], 1
    %s638 = scalar_lea.sflag [#allocation5], 1
    %639 = vsyncpa %s638, 1

</llo_original>
